<compile_context>
chip_gen: v7x
topology: tpu7x:2x2x1
jax: 0.10.0
libtpu: 0.0.40
codegen_flags: <defaults>
</compile_context>

<pallas_src>
import math

import jax
import jax.numpy as jnp
import numpy as np
from jax.experimental import pallas as pl
from jax.experimental.pallas import tpu as pltpu


def _round_up(x, m):
    return ((x + m - 1) // m) * m


def _proj_kernel(x_ref, w_ref, b_ref, o_ref, acc_ref):
    """Grid step (i, j, k): acc[i, j] += x[i, k] @ w[k, j]; bias + store on last k."""
    k = pl.program_id(2)

    @pl.when(k == 0)
    def _():
        acc_ref[...] = jnp.zeros_like(acc_ref)

    # bf16 MXU operands (W is already bf16 from init), f32 accumulation.
    acc_ref[...] += jnp.dot(x_ref[...].astype(jnp.bfloat16), w_ref[...],
                            preferred_element_type=jnp.float32)

    @pl.when(k == pl.num_programs(2) - 1)
    def _():
        o_ref[...] = (acc_ref[...] + b_ref[...]).astype(o_ref.dtype)


def _vmem_budget_bytes(tm, tn, tk, x_itemsize, w_itemsize, out_itemsize):
    return (2 * tm * tk * x_itemsize        # x tiles, double-buffered
            + 2 * tk * tn * w_itemsize      # W tiles (bf16), double-buffered
            + 2 * 8 * tn * 4                # bias tile (f32), double-buffered
            + 2 * tm * tn * out_itemsize    # output tiles, double-buffered
            + tm * tn * 4)                  # f32 accumulator scratch


def make_projection(w, b, *, tm=512, tn=1024, tk=2048):
    """Pre-pads & pre-casts W/b ONCE; returns a jitted forward fn x -> x @ W + b."""
    K, N = w.shape
    assert b.shape == (N,)

    # Lane-friendly padded parameter dims.  Tiles are multiples of (8, 128);
    # the large defaults (1024/2048) are also multiples of 256 for MXU fill
    # on v6e/v7x.
    Np_min = _round_up(N, 128)
    Kp_min = _round_up(K, 128)
    tn_eff = min(tn, Np_min)
    tk_eff = Kp_min if Kp_min <= tk else tk   # single k step when K fits
    Np = _round_up(Np_min, tn_eff)
    Kp = _round_up(Kp_min, tk_eff)

    # Parameter padding + bf16 cast happen HERE, once — not per forward call.
    w_p = jnp.pad(w, ((0, Kp - K), (0, Np - N))).astype(jnp.bfloat16)
    b_p = jnp.pad(b, (0, Np - N)).astype(jnp.float32).reshape(1, Np)

    try:
        phys_vmem = int(pltpu.get_tpu_info().vmem_capacity_bytes)
    except Exception:
        phys_vmem = 64 * 1024 * 1024          # conservative (v7x per-TC) fallback
    vmem_cap = phys_vmem * 3 // 4             # headroom for compiler scratch

    def _forward(x, w_arg, b_arg):
        B, S, Kx = x.shape
        M = B * S
        x2 = x.reshape(M, Kx)

        tm_eff = min(tm, _round_up(M, 8))
        Mp = _round_up(M, tm_eff)
        x_p = jnp.pad(x2, ((0, Mp - M), (0, Kp - Kx)))

        grid = (Mp // tm_eff, Np // tn_eff, Kp // tk_eff)

        x_isz = jnp.dtype(x.dtype).itemsize
        out_isz = x_isz
        vmem_bytes = _vmem_budget_bytes(tm_eff, tn_eff, tk_eff, x_isz, 2, out_isz)
        vmem_limit = int(min(vmem_cap, max(2 * vmem_bytes, 16 * 1024 * 1024)))

        cost = pl.CostEstimate(
            flops=2 * Mp * Np * Kp,
            transcendentals=0,
            bytes_accessed=(Mp * Kp * x_isz * grid[1]      # x re-read per j tile
                            + Kp * Np * 2 * grid[0]        # W re-read per i tile
                            + Np * 4 * grid[0]             # bias
                            + Mp * Np * out_isz))          # output written once

        out_p = pl.pallas_call(
            _proj_kernel,
            out_shape=jax.ShapeDtypeStruct((Mp, Np), x.dtype),
            grid_spec=pltpu.PrefetchScalarGridSpec(
                num_scalar_prefetch=0,
                grid=grid,
                in_specs=[
                    pl.BlockSpec((tm_eff, tk_eff), lambda i, j, k: (i, k)),
                    pl.BlockSpec((tk_eff, tn_eff), lambda i, j, k: (k, j)),
                    pl.BlockSpec((1, tn_eff), lambda i, j, k: (0, j)),
                ],
                out_specs=pl.BlockSpec((tm_eff, tn_eff), lambda i, j, k: (i, j)),
                scratch_shapes=[pltpu.VMEM((tm_eff, tn_eff), jnp.float32)],
            ),
            compiler_params=pltpu.CompilerParams(
                dimension_semantics=("parallel", "parallel", "arbitrary"),
                vmem_limit_bytes=vmem_limit),
            cost_estimate=cost,
        )(x_p, w_arg, b_arg)

        return out_p[:M, :N].reshape(B, S, N)

    jitted = jax.jit(_forward)

    def projection(x):
        assert x.shape[-1] == K
        return jitted(x, w_p, b_p)

    return projection


def _reference(x, w, b):
    """Pure-JAX reference mirroring the PyTorch forward (nn.Linear)."""
    return x @ w + b


if __name__ == "__main__":
    # Small shapes consistent with the module: (Batch, seq_len, d_model) -> vocab.
    B, S, D, V = 2, 8, 32, 50

    root = jax.random.PRNGKey(0)
    kx, kw, kb = jax.random.split(root, 3)

    x = jax.random.normal(kx, (B, S, D), jnp.float32)

    # nn.Linear-style init: uniform(+/- 1/sqrt(fan_in)).  w stored as
    # (d_model, vocab_size) == W_pt.T so the kernel computes x @ w + b.
    bound = 1.0 / math.sqrt(D)
    w = jax.random.uniform(kw, (D, V), jnp.float32, -bound, bound)
    b = jax.random.uniform(kb, (V,), jnp.float32, -bound, bound)

    proj_fn = make_projection(w, b)          # params padded + cast once, here
    out = proj_fn(x)
    out = jax.block_until_ready(out)

    ref = _reference(x, w, b)
    # bf16 MXU operands with f32 accumulation -> looser tolerance than pure f32.
    np.testing.assert_allclose(np.asarray(out), np.asarray(ref),
                               rtol=2e-2, atol=2e-2)
    print("KERNEL_OK")
</pallas_src>

<mosaic_0001>
module attributes {stable_mosaic.version = 11 : i64} {
  func.func @_proj_kernel(%arg0: i32, %arg1: i32, %arg2: i32, %arg3: memref<16x128xf32, #tpu.memory_space<vmem>>, %arg4: memref<128x128xbf16, #tpu.memory_space<vmem>>, %arg5: memref<1x128xf32, #tpu.memory_space<vmem>>, %arg6: memref<16x128xf32, #tpu.memory_space<vmem>>, %arg7: memref<16x128xf32, #tpu.memory_space<vmem>>) attributes {dimension_semantics = [#tpu.dimension_semantics<parallel>, #tpu.dimension_semantics<parallel>, #tpu.dimension_semantics<arbitrary>], iteration_bounds = array<i64: 1, 1, 1>, scalar_prefetch = 0 : i64, scratch_operands = 1 : i64, tpu.core_type = #tpu.core_type<tc>, window_params = [{transform_indices = @transform_0, window_bounds = array<i64: 16, 128>}, {transform_indices = @transform_1, window_bounds = array<i64: 128, 128>}, {transform_indices = @transform_2, window_bounds = array<i64: 1, 128>}, {transform_indices = @transform_3, window_bounds = array<i64: 16, 128>}]} {
    %c0_i32 = arith.constant 0 : i32
    %0 = arith.cmpi eq, %arg2, %c0_i32 : i32
    %1 = arith.extui %0 : i1 to i32
    %c0_i32_0 = arith.constant 0 : i32
    %2 = arith.cmpi ne, %1, %c0_i32_0 : i32
    scf.if %2 {
      %cst_10 = arith.constant 0.000000e+00 : f32
      %13 = vector.broadcast %cst_10 : f32 to vector<16x128xf32>
      %c0_11 = arith.constant 0 : index
      %c0_12 = arith.constant 0 : index
      %14 = vector.load %arg7[%c0_11, %c0_12] : memref<16x128xf32, #tpu.memory_space<vmem>>, vector<16x128xf32>
      tpu.vector_store %arg7[%c0_11, %c0_12], %13 {strides = array<i32>} : memref<16x128xf32, #tpu.memory_space<vmem>>, vector<16x128xf32>,
    } else {
    }
    %c0 = arith.constant 0 : index
    %c0_1 = arith.constant 0 : index
    %3 = vector.load %arg7[%c0, %c0_1] : memref<16x128xf32, #tpu.memory_space<vmem>>, vector<16x128xf32>
    %c0_2 = arith.constant 0 : index
    %c0_3 = arith.constant 0 : index
    %4 = vector.load %arg3[%c0_2, %c0_3] : memref<16x128xf32, #tpu.memory_space<vmem>>, vector<16x128xf32>
    %5 = arith.truncf %4 : vector<16x128xf32> to vector<16x128xbf16>
    %c0_4 = arith.constant 0 : index
    %c0_5 = arith.constant 0 : index
    %6 = vector.load %arg4[%c0_4, %c0_5] : memref<128x128xbf16, #tpu.memory_space<vmem>>, vector<128x128xbf16>
    %cst = arith.constant dense<0.000000e+00> : vector<16x128xf32>
    %7 = tpu.matmul %5, %6, %cst {dimension_numbers = #tpu.dot_dimension_numbers<[1], [0], [0], [1], [0, 0, 1, 1], [], []>} : vector<16x128xbf16>, vector<128x128xbf16>, vector<16x128xf32> -> vector<16x128xf32>
    %8 = arith.addf %3, %7 : vector<16x128xf32>
    %c0_6 = arith.constant 0 : index
    %c0_7 = arith.constant 0 : index
    %9 = vector.load %arg7[%c0_6, %c0_7] : memref<16x128xf32, #tpu.memory_space<vmem>>, vector<16x128xf32>
    tpu.vector_store %arg7[%c0_6, %c0_7], %8 {strides = array<i32>} : memref<16x128xf32, #tpu.memory_space<vmem>>, vector<16x128xf32>,
    %c0_i32_8 = arith.constant 0 : i32
    %10 = arith.cmpi eq, %arg2, %c0_i32_8 : i32
    %11 = arith.extui %10 : i1 to i32
    %c0_i32_9 = arith.constant 0 : i32
    %12 = arith.cmpi ne, %11, %c0_i32_9 : i32
    scf.if %12 {
      %c0_10 = arith.constant 0 : index
      %c0_11 = arith.constant 0 : index
      %13 = vector.load %arg7[%c0_10, %c0_11] : memref<16x128xf32, #tpu.memory_space<vmem>>, vector<16x128xf32>
      %c0_12 = arith.constant 0 : index
      %c0_13 = arith.constant 0 : index
      %14 = vector.load %arg5[%c0_12, %c0_13] : memref<1x128xf32, #tpu.memory_space<vmem>>, vector<1x128xf32>
      %15 = vector.broadcast %14 : vector<1x128xf32> to vector<16x128xf32>
      %16 = arith.addf %13, %15 : vector<16x128xf32>
      %c0_14 = arith.constant 0 : index
      %c0_15 = arith.constant 0 : index
      %17 = vector.load %arg6[%c0_14, %c0_15] : memref<16x128xf32, #tpu.memory_space<vmem>>, vector<16x128xf32>
      tpu.vector_store %arg6[%c0_14, %c0_15], %16 {strides = array<i32>} : memref<16x128xf32, #tpu.memory_space<vmem>>, vector<16x128xf32>,
    } else {
    }
    return
  }
  func.func @transform_0(%arg0: i32, %arg1: i32, %arg2: i32) -> (i32, i32) {
    %c0_i32 = arith.constant 0 : i32
    return %arg0, %arg2 : i32, i32
  }
  func.func @transform_1(%arg0: i32, %arg1: i32, %arg2: i32) -> (i32, i32) {
    %c0_i32 = arith.constant 0 : i32
    return %arg2, %arg1 : i32, i32
  }
  func.func @transform_2(%arg0: i32, %arg1: i32, %arg2: i32) -> (i32, i32) {
    %c0_i32 = arith.constant 0 : i32
    %c0_i32_0 = arith.constant 0 : i32
    return %c0_i32, %arg1 : i32, i32
  }
  func.func @transform_3(%arg0: i32, %arg1: i32, %arg2: i32) -> (i32, i32) {
    %c0_i32 = arith.constant 0 : i32
    return %arg0, %arg1 : i32, i32
  }
}

</mosaic_0001>

<llo_original>
// kernel: _forward.1
$region0: #{_forward.1}
  #allocation0 [shape = 'u32[]', space=smem, size = 0x4, offset = 0x4, fixed_abs, tag = 'smem constant byte address 0x4 - core index']
  #allocation1 [shape = 'u32[144,128]{1,0:T(1,128)}', space=vmem, size = 0x12000, scoped, tag = 'internal scratch']
  #allocation2 [shape = 'f32[16,128]{1,0:T(8,128)}', space=vmem, size = 0x2000, scoped, tag = 'scratch operand']
  %s0 = inlined_call_operand.vmem [shape: f32[16,128], index: 0, kind: input, shape index: {}]
  %s1 = inlined_call_operand.hbm [shape: bf16[128,128], index: 1, kind: input, shape index: {}]
  %s2 = inlined_call_operand.vmem [shape: f32[1,128], index: 2, kind: input, shape index: {}]
  %s3 = inlined_call_operand.vmem [shape: f32[16,128], index: 3, kind: output, shape index: {}]
  %s4 = sld [smem:[#allocation0]]
  $region34: #{_forward.1} parent=0
    _
  %s6 = ssub.s32 1, %s4
  %s7 = scalar_select 0, %s6, %s4
  $region1: #{_forward.1} parent=0
    #allocation3 [shape = 'u8[32768]{0}', space=vmem, size = 0x8000, scoped, tag = 'input window, operand 1, single buffered']
    #allocation4 [shape = 's32[1]{0}', space=sflag, size = 0x4, scoped, tag = 'scoped memory for _forward.1']
    %8 = vsyncpa [#allocation4], 0
    // Predicated region
    $region2: #{_forward.1} parent=1 // pred_check
      _
    $region3: #{_forward.1} parent=1 // pred_check_branch
      %10 = sbr.rel (0) target = $region5
    $region4: #{_forward.1} parent=1 // pred_region
      _
    $region5: #{_forward.1} parent=1 // pred_fallthru
      _
    // Predicated region
    $region6: #{_forward.1} parent=1 // pred_check
      _
    $region7: #{_forward.1} parent=1 // pred_check_branch
      %12 = sbr.rel (0) target = $region9
    $region8: #{_forward.1} parent=1 // pred_region
      %s14 = ssub.s32 1024, 1024
      %15 = vsyncadd [#allocation4], %s14
      %s16 = sshll.u32 [#allocation3], 4
      %s17 = int_to_ptr.vmem [resolvable:$true] %s16
      %22 = dma.hbm_to_vmem [thread:$0]  %s1, 1024, %s17, [#allocation4], 64, 64, 4
    $region9: #{_forward.1} parent=1 // pred_fallthru
      _
    // Predicated region
    $region10: #{_forward.1} parent=1 // pred_check
      _
    $region11: #{_forward.1} parent=1 // pred_check_branch
      %24 = sbr.rel (0) target = $region13
    $region12: #{_forward.1} parent=1 // pred_region
      _
    $region13: #{_forward.1} parent=1 // pred_fallthru
      _
    // Predicated region
    $region14: #{_forward.1} parent=1 // pred_check
      _
    $region15: #{_forward.1} parent=1 // pred_check_branch
      %26 = sbr.rel (0) target = $region17
    $region16: #{_forward.1} parent=1 // pred_region
      %27 = dma.done [#allocation4], 1024
    $region17: #{_forward.1} parent=1 // pred_fallthru
      _
    %p29 = scmp.eq.s32.totalorder 0, 0
    // Predicated region
    $region18: #{_forward.1} parent=1 // pred_check
      %p30 = pneg %p29
    $region19: #{_forward.1} parent=1 // pred_check_branch
      %32 = sbr.rel (%p30) target = $region21
    $region20: #{_forward.1} parent=1 // pred_region
      %33 = vst [vmem:[#allocation2] sm:$0xff] 0.0
      %34 = vst [vmem:[#allocation2 + $0x8] sm:$0xff] 0.0
    $region21: #{_forward.1} parent=1 // pred_fallthru
      _
    %v35 = vld [vmem:[#allocation2] sm:$0xff]
    %v36 = vld [vmem:[#allocation2 + $0x8] sm:$0xff]
    %v37 = vld [vmem:[%s0] sm:$0xff]
    %v38 = vld [vmem:[%s0 + $0x8] sm:$0xff]
    %v39 = vpack.c.bf16 %v38, %v37
    %v40 = vld [vmem:[#allocation3] sm:$0xf]
    %v41 = vld [vmem:[#allocation3 + $0x4] sm:$0xf]
    %v42 = vld [vmem:[#allocation3 + $0x8] sm:$0xf]
    %v43 = vld [vmem:[#allocation3 + $0xc] sm:$0xf]
    %v44 = vld [vmem:[#allocation3 + $0x10] sm:$0xf]
    %v45 = vld [vmem:[#allocation3 + $0x14] sm:$0xf]
    %v46 = vld [vmem:[#allocation3 + $0x18] sm:$0xf]
    %v47 = vld [vmem:[#allocation3 + $0x1c] sm:$0xf]
    %v48 = vld [vmem:[#allocation3 + $0x20] sm:$0xf]
    %v49 = vld [vmem:[#allocation3 + $0x24] sm:$0xf]
    %v50 = vld [vmem:[#allocation3 + $0x28] sm:$0xf]
    %v51 = vld [vmem:[#allocation3 + $0x2c] sm:$0xf]
    %v52 = vld [vmem:[#allocation3 + $0x30] sm:$0xf]
    %v53 = vld [vmem:[#allocation3 + $0x34] sm:$0xf]
    %v54 = vld [vmem:[#allocation3 + $0x38] sm:$0xf]
    %v55 = vld [vmem:[#allocation3 + $0x3c] sm:$0xf]
    %v72 = vunpack.c.l.b16 %v40
    %v73 = vunpack.c.l.b16 %v41
    %v74 = vunpack.c.l.b16 %v42
    %v75 = vunpack.c.l.b16 %v43
    %v76 = vunpack.c.l.b16 %v44
    %v77 = vunpack.c.l.b16 %v45
    %v78 = vunpack.c.l.b16 %v46
    %v79 = vunpack.c.l.b16 %v47
    %v80 = vunpack.c.l.b16 %v48
    %v81 = vunpack.c.l.b16 %v49
    %v82 = vunpack.c.l.b16 %v50
    %v83 = vunpack.c.l.b16 %v51
    %v84 = vunpack.c.l.b16 %v52
    %v85 = vunpack.c.l.b16 %v53
    %v86 = vunpack.c.l.b16 %v54
    %v87 = vunpack.c.l.b16 %v55
    %v88 = vpack.c.b16 %v73, %v72
    %v89 = vpack.c.b16 %v75, %v74
    %v90 = vpack.c.b16 %v77, %v76
    %v91 = vpack.c.b16 %v79, %v78
    %v92 = vpack.c.b16 %v81, %v80
    %v93 = vpack.c.b16 %v83, %v82
    %v94 = vpack.c.b16 %v85, %v84
    %v95 = vpack.c.b16 %v87, %v86
    %104 = vmatprep.subr.bf16.mxu0 0
    %105 = vmatpush1.bf16.msra.mxu0 %v88
    %106 = vmatprep.subr.bf16.mxu0 0
    %107 = vmatpush1.bf16.msra.mxu0 %v89
    %108 = vmatprep.subr.bf16.mxu0 0
    %109 = vmatpush1.bf16.msra.mxu0 %v90
    %110 = vmatprep.subr.bf16.mxu0 0
    %111 = vmatpush1.bf16.msra.mxu0 %v91
    %112 = vmatprep.subr.bf16.mxu0 0
    %113 = vmatpush1.bf16.msra.mxu0 %v92
    %114 = vmatprep.subr.bf16.mxu0 0
    %115 = vmatpush1.bf16.msra.mxu0 %v93
    %116 = vmatprep.subr.bf16.mxu0 0
    %117 = vmatpush1.bf16.msra.mxu0 %v94
    %118 = vmatprep.subr.bf16.mxu0 0
    %119 = vmatpush1.bf16.msra.mxu0 %v95
    %120 = vmatprep.subr.bf16.mxu0 0
    %121 = vmatpush1.bf16.msra.mxu0 0
    %122 = vmatprep.subr.bf16.mxu0 0
    %123 = vmatpush1.bf16.msra.mxu0 0
    %124 = vmatprep.subr.bf16.mxu0 0
    %125 = vmatpush1.bf16.msra.mxu0 0
    %126 = vmatprep.subr.bf16.mxu0 0
    %127 = vmatpush1.bf16.msra.mxu0 0
    %128 = vmatprep.subr.bf16.mxu0 0
    %129 = vmatpush1.bf16.msra.mxu0 0
    %130 = vmatprep.subr.bf16.mxu0 0
    %131 = vmatpush1.bf16.msra.mxu0 0
    %132 = vmatprep.subr.bf16.mxu0 0
    %133 = vmatpush1.bf16.msra.mxu0 0
    %134 = vmatprep.subr.bf16.mxu0 0
    %135 = vmatpush1.bf16.msra.mxu0 0
    %136 = vmatprep.mubr.bf16.mxu0 0
    %137 = vmatmul.mubr.bf16.gmra.mrb[0].mxu0 %v39
    %v138 = vpop.f32.mrb[0].mxu0
    %v139 = vadd.f32 0.0, %v138
    %v140 = vpop.f32.mrb[0].mxu0
    %v141 = vpop.f32.mrb[0].mxu0
    %v142 = vadd.f32 0.0, %v141
    %v143 = vpop.f32.mrb[0].mxu0
    %144 = vdwg.mxu0
    %v145 = vadd.f32 %v35, %v139
    %v146 = vadd.f32 %v36, %v142
    %147 = vst [vmem:[#allocation2] sm:$0xff] %v145
    %148 = vst [vmem:[#allocation2 + $0x8] sm:$0xff] %v146
    // Predicated region
    $region22: #{_forward.1} parent=1 // pred_check
      %p149 = pneg %p29
    $region23: #{_forward.1} parent=1 // pred_check_branch
      %151 = sbr.rel (%p149) target = $region25
    $region24: #{_forward.1} parent=1 // pred_region
      %v152 = vld [vmem:[#allocation2] sm:$0xff]
      %v153 = vld [vmem:[#allocation2 + $0x8] sm:$0xff]
      %v154 = vld [vmem:[%s2] sm:$0x1]
      %v156 = vlaneseq
      %v157 = vshrl.u32 %v156, 7
      %v158 = vsub.s32 0, %v157
      %v159 = vrot.slane %v154, %v158
      %v161 = vadd.f32 %v152, %v159
      %v162 = vadd.f32 %v153, %v159
      %163 = vst [vmem:[%s3] sm:$0xff] %v161
      %164 = vst [vmem:[%s3 + $0x8] sm:$0xff] %v162
    $region25: #{_forward.1} parent=1 // pred_fallthru
      _
    // Predicated region
    $region26: #{_forward.1} parent=1 // pred_check
      _
    $region27: #{_forward.1} parent=1 // pred_check_branch
      %166 = sbr.rel (0) target = $region29
    $region28: #{_forward.1} parent=1 // pred_region
      _
    $region29: #{_forward.1} parent=1 // pred_fallthru
      _
    // Predicated region
    $region30: #{_forward.1} parent=1 // pred_check
      _
    $region31: #{_forward.1} parent=1 // pred_check_branch
      %168 = sbr.rel (0) target = $region33
    $region32: #{_forward.1} parent=1 // pred_region
      _
    $region33: #{_forward.1} parent=1 // pred_fallthru
      _
    %169 = vsyncpa [#allocation4], 1

</llo_original>
